<compile_context>
chip_gen: v6e
topology: v6e:2x2x1
jax: 0.10.0
libtpu: 0.0.40
codegen_flags: <defaults>
</compile_context>

<pallas_src>
import jax
import jax.numpy as jnp
from jax.experimental import pallas as pl
from jax.experimental.pallas import tpu as pltpu


def grn_kernel(x_ref, gb_ref, o_ref):
    # x_ref / o_ref: (TR, HW)   gb_ref: (TR, 2) with [:,0]=gamma, [:,1]=beta.

    # Pass 1: per-row sum of squares over the spatial axis (f32 accumulation).
    # Do NOT keep the f32 tile live across the reduction; re-read below.
    ss = jnp.sum(x_ref[...].astype(jnp.float32) ** 2, axis=-1, keepdims=True)
    gx = jnp.sqrt(ss)                                   # (TR, 1)

    # mean over a size-1 trailing dim is the identity in the reference module,
    # so nx = gx / (gx + 1e-6).  Tiny (TR, 1) tensor -> exact division.
    nx = gx / (gx + 1e-6)

    gb = gb_ref[...].astype(jnp.float32)                # (TR, 2)
    g = gb[:, 0:1]
    b = gb[:, 1:2]

    # Fused: gamma*(x*nx) + beta + x  ==  x*(gamma*nx + 1) + beta
    scale = g * nx + 1.0                                # (TR, 1), broadcast over lanes

    # Pass 2: re-read x (already resident in VMEM) and apply.
    o_ref[...] = (x_ref[...].astype(jnp.float32) * scale + b).astype(o_ref.dtype)


def global_response_norm(x, gamma, beta, *, target_block_bytes=4 * 1024 * 1024):
    """x: (N, C, *spatial) NCHW-style. gamma/beta: (1, C, 1, ..., 1)."""
    N, C = x.shape[0], x.shape[1]
    HW = 1
    for s in x.shape[2:]:
        HW *= s
    NC = N * C

    itemsize = jnp.dtype(x.dtype).itemsize
    min_sub = {4: 8, 2: 16, 1: 32}.get(itemsize, 8)

    # (N*C, HW): each row's L2 norm over HW is exactly the per-(n, c) spatial
    # norm.  Reshape only -- no padding, no de-pad slice (each would be a full
    # extra HBM pass outside the kernel).
    xr = x.reshape(NC, HW)

    # ---- row-tile sizing ----------------------------------------------------
    row_bytes = max(1, HW * itemsize)
    rows_fit = max(1, target_block_bytes // row_bytes)
    TR = max(min_sub, (rows_fit // min_sub) * min_sub)
    # Ensure the single (parallel) grid axis has >= 2 steps whenever NC allows,
    # so v7x's two TensorCores both get work (irrelevant on v5e/v6e).
    if NC >= 2 * min_sub:
        TR = min(TR, max(min_sub, (NC // 2 // min_sub) * min_sub))
    if TR >= NC:
        # Full second-to-last extent is exempt from the sublane-multiple rule.
        TR = NC
    # Keep the double-buffered x-in + out footprint comfortably inside VMEM
    # (v7x has only 64 MiB physical; we request 32 MiB of scoped VMEM below).
    while TR > min_sub and 4 * TR * row_bytes > 24 * 1024 * 1024:
        TR = max(min_sub, (TR // 2 // min_sub) * min_sub)
    # TODO(synk): if a single row (HW) ever exceeds ~6 MiB, also chunk HW with
    # an in-kernel accumulator; not needed for typical GRN spatial sizes.

    grid = (pl.cdiv(NC, TR),)

    # Tiny (NC, 2) side input: column 0 = gamma, column 1 = beta, row -> c = row % C.
    g_row = jnp.broadcast_to(gamma.reshape(1, C), (N, C)).reshape(NC)
    b_row = jnp.broadcast_to(beta.reshape(1, C), (N, C)).reshape(NC)
    gb = jnp.stack([g_row, b_row], axis=-1)

    cost = pl.CostEstimate(
        flops=5 * NC * HW,
        transcendentals=2 * NC,
        bytes_accessed=2 * NC * HW * itemsize
        + gb.size * jnp.dtype(gb.dtype).itemsize,
    )

    out = pl.pallas_call(
        grn_kernel,
        out_shape=jax.ShapeDtypeStruct((NC, HW), x.dtype),
        grid_spec=pl.GridSpec(
            grid=grid,
            in_specs=[
                pl.BlockSpec((TR, HW), lambda r: (r, 0)),
                pl.BlockSpec((TR, 2), lambda r: (r, 0)),
            ],
            out_specs=pl.BlockSpec((TR, HW), lambda r: (r, 0)),
        ),
        compiler_params=pltpu.CompilerParams(
            dimension_semantics=("parallel",),
            vmem_limit_bytes=32 * 1024 * 1024,
        ),
        cost_estimate=cost,
    )(xr, gb)

    return out.reshape(x.shape)


def grn_reference(x, gamma, beta):
    """Pure-JAX reference mirroring the PyTorch forward exactly."""
    gx = jnp.sqrt(
        jnp.sum(x.astype(jnp.float32) ** 2, axis=tuple(range(2, x.ndim)), keepdims=True)
    )
    nx = gx / (jnp.mean(gx, axis=-1, keepdims=True) + 1e-6)
    return (gamma * (x * nx) + beta + x).astype(x.dtype)


if __name__ == "__main__":
    key = jax.random.PRNGKey(0)
    kx, kg, kb, kx2, kg2, kb2 = jax.random.split(key, 6)

    # ---- primary case: NCHW, 16x16 spatial ----------------------------------
    N, C, H, W = 2, 4, 16, 16
    x = jax.random.normal(kx, (N, C, H, W), dtype=jnp.float32)
    # Module __init__ uses zeros for gamma/beta (shape (1, C, 1, 1)); use small
    # deterministic random values so the kernel path is exercised non-trivially.
    gamma = 0.1 * jax.random.normal(kg, (1, C, 1, 1), dtype=jnp.float32)
    beta = 0.1 * jax.random.normal(kb, (1, C, 1, 1), dtype=jnp.float32)

    out = jax.block_until_ready(global_response_norm(x, gamma, beta))
    ref = grn_reference(x, gamma, beta)
    assert out.shape == (N, C, H, W)
    assert jnp.allclose(out, ref, atol=1e-4, rtol=1e-4), "mismatch vs reference (case 1)"

    # ---- secondary case: non-128 spatial width, NC not a multiple of the row
    # tile (exercises the unpadded / masked-boundary store path) --------------
    N2, C2, H2, W2 = 1, 20, 7, 7
    x2 = jax.random.normal(kx2, (N2, C2, H2, W2), dtype=jnp.float32)
    gamma2 = 0.1 * jax.random.normal(kg2, (1, C2, 1, 1), dtype=jnp.float32)
    beta2 = 0.1 * jax.random.normal(kb2, (1, C2, 1, 1), dtype=jnp.float32)

    out2 = jax.block_until_ready(global_response_norm(x2, gamma2, beta2))
    ref2 = grn_reference(x2, gamma2, beta2)
    assert out2.shape == (N2, C2, H2, W2)
    assert jnp.allclose(out2, ref2, atol=1e-4, rtol=1e-4), "mismatch vs reference (case 2)"

    print("KERNEL_OK")
</pallas_src>

<mosaic_0001>
module attributes {stable_mosaic.version = 11 : i64} {
  func.func @grn_kernel(%arg0: i32, %arg1: memref<8x256xf32, #tpu.memory_space<vmem>>, %arg2: memref<8x2xf32, #tpu.memory_space<vmem>>, %arg3: memref<8x256xf32, #tpu.memory_space<vmem>>) attributes {dimension_semantics = [#tpu.dimension_semantics<parallel>], iteration_bounds = array<i64: 1>, scalar_prefetch = 0 : i64, scratch_operands = 0 : i64, tpu.core_type = #tpu.core_type<tc>, window_params = [{transform_indices = @transform_0, window_bounds = array<i64: 8, 256>}, {transform_indices = @transform_1, window_bounds = array<i64: 8, 2>}, {transform_indices = @transform_2, window_bounds = array<i64: 8, 256>}]} {
    %c0 = arith.constant 0 : index
    %c0_0 = arith.constant 0 : index
    %0 = vector.load %arg1[%c0, %c0_0] : memref<8x256xf32, #tpu.memory_space<vmem>>, vector<8x256xf32>
    %1 = arith.mulf %0, %0 : vector<8x256xf32>
    %cst = arith.constant dense<0.000000e+00> : vector<8xf32>
    %2 = vector.multi_reduction <add>, %1, %cst [1] : vector<8x256xf32> to vector<8xf32>
    %3 = vector.shape_cast %2 : vector<8xf32> to vector<8x1xf32>
    %4 = math.sqrt %3 : vector<8x1xf32>
    %cst_1 = arith.constant 9.99999997E-7 : f32
    %5 = vector.broadcast %cst_1 : f32 to vector<8x1xf32>
    %6 = arith.addf %4, %5 : vector<8x1xf32>
    %7 = arith.divf %4, %6 : vector<8x1xf32>
    %c0_2 = arith.constant 0 : index
    %c0_3 = arith.constant 0 : index
    %8 = vector.load %arg2[%c0_2, %c0_3] : memref<8x2xf32, #tpu.memory_space<vmem>>, vector<8x2xf32>
    %9 = vector.extract_strided_slice %8 {offsets = [0, 0], sizes = [8, 1], strides = [1, 1]} : vector<8x2xf32> to vector<8x1xf32>
    %10 = vector.extract_strided_slice %8 {offsets = [0, 1], sizes = [8, 1], strides = [1, 1]} : vector<8x2xf32> to vector<8x1xf32>
    %11 = arith.mulf %9, %7 : vector<8x1xf32>
    %cst_4 = arith.constant 1.000000e+00 : f32
    %12 = vector.broadcast %cst_4 : f32 to vector<8x1xf32>
    %13 = arith.addf %11, %12 : vector<8x1xf32>
    %c0_5 = arith.constant 0 : index
    %c0_6 = arith.constant 0 : index
    %14 = vector.load %arg1[%c0_5, %c0_6] : memref<8x256xf32, #tpu.memory_space<vmem>>, vector<8x256xf32>
    %15 = vector.broadcast %13 : vector<8x1xf32> to vector<8x256xf32>
    %16 = arith.mulf %14, %15 : vector<8x256xf32>
    %17 = vector.broadcast %10 : vector<8x1xf32> to vector<8x256xf32>
    %18 = arith.addf %16, %17 : vector<8x256xf32>
    %c0_7 = arith.constant 0 : index
    %c0_8 = arith.constant 0 : index
    %19 = vector.load %arg3[%c0_7, %c0_8] : memref<8x256xf32, #tpu.memory_space<vmem>>, vector<8x256xf32>
    tpu.vector_store %arg3[%c0_7, %c0_8], %18 {strides = array<i32>} : memref<8x256xf32, #tpu.memory_space<vmem>>, vector<8x256xf32>,
    return
  }
  func.func @transform_0(%arg0: i32) -> (i32, i32) {
    %c0_i32 = arith.constant 0 : i32
    %c0_i32_0 = arith.constant 0 : i32
    return %arg0, %c0_i32 : i32, i32
  }
  func.func @transform_1(%arg0: i32) -> (i32, i32) {
    %c0_i32 = arith.constant 0 : i32
    %c0_i32_0 = arith.constant 0 : i32
    return %arg0, %c0_i32 : i32, i32
  }
  func.func @transform_2(%arg0: i32) -> (i32, i32) {
    %c0_i32 = arith.constant 0 : i32
    %c0_i32_0 = arith.constant 0 : i32
    return %arg0, %c0_i32 : i32, i32
  }
}

</mosaic_0001>

<llo_original>
// kernel: tpu_custom_call.1
$region0: #{tpu_custom_call.1}
  #allocation0 [shape = 'u32[]', space=smem, size = 0x4, offset = 0x4, fixed_abs, tag = 'smem constant byte address 0x4 - core index']
  #allocation1 [shape = 'u32[144,128]{1,0:T(1,128)}', space=vmem, size = 0x12000, scoped, tag = 'internal scratch']
  %s0 = inlined_call_operand.hbm [shape: f32[8,256], index: 0, kind: input, shape index: {}]
  %s1 = inlined_call_operand.vmem [shape: f32[8,2], index: 1, kind: input, shape index: {}]
  %s2 = inlined_call_operand.hbm [shape: f32[8,256], index: 2, kind: output, shape index: {}]
  %s3 = sld [smem:[#allocation0]]
  $region22: #{tpu_custom_call.1} parent=0
    _
  %s5 = ssub.s32 1, %s3
  %s6 = scalar_select 0, %s5, %s3
  $region1: #{tpu_custom_call.1} parent=0
    #allocation2 [shape = 'u8[8192]{0}', space=vmem, size = 0x2000, scoped, tag = 'input window, operand 0, single buffered']
    #allocation3 [shape = 's32[1]{0}', space=sflag, size = 0x4, scoped, tag = 'scoped memory for tpu_custom_call.1']
    #allocation4 [shape = 's32[1]{0}', space=sflag, size = 0x4, scoped, tag = 'scoped memory for tpu_custom_call.1']
    #allocation5 [shape = 'u8[8192]{0}', space=vmem, size = 0x2000, scoped, tag = 'output window, operand 0, single buffered']
    %7 = vsyncpa [#allocation3], 0
    %8 = vsyncpa [#allocation4], 0
    // Predicated region
    $region2: #{tpu_custom_call.1} parent=1 // pred_check
      _
    $region3: #{tpu_custom_call.1} parent=1 // pred_check_branch
      %10 = sbr.rel (0) target = $region5
    $region4: #{tpu_custom_call.1} parent=1 // pred_region
      %s12 = ssub.s32 256, 256
      %13 = vsyncadd [#allocation3], %s12
      %s15 = sshll.u32 [#allocation2], 4
      %s16 = int_to_ptr.vmem [resolvable:$true] %s15
      %18 = dma.hbm_to_vmem [thread:$0]  %s0, 256, %s16, [#allocation3]
    $region5: #{tpu_custom_call.1} parent=1 // pred_fallthru
      _
    // Predicated region
    $region6: #{tpu_custom_call.1} parent=1 // pred_check
      _
    $region7: #{tpu_custom_call.1} parent=1 // pred_check_branch
      %20 = sbr.rel (0) target = $region9
    $region8: #{tpu_custom_call.1} parent=1 // pred_region
      _
    $region9: #{tpu_custom_call.1} parent=1 // pred_fallthru
      _
    // Predicated region
    $region10: #{tpu_custom_call.1} parent=1 // pred_check
      _
    $region11: #{tpu_custom_call.1} parent=1 // pred_check_branch
      %22 = sbr.rel (0) target = $region13
    $region12: #{tpu_custom_call.1} parent=1 // pred_region
      %23 = dma.done [#allocation3], 256
    $region13: #{tpu_custom_call.1} parent=1 // pred_fallthru
      _
    %v24 = vld [vmem:[#allocation2] sm:$0xff]
    %v25 = vld [vmem:[#allocation2 + $0x8] sm:$0xff]
    %v26 = vmul.f32 %v24, %v24
    %v27 = vmul.f32 %v25, %v25
    %v28 = vadd.f32 %v26, %v27
    %29 = vadd.xlane.f32.xlu0 %v28
    %v30 = vpop.xlane.xlu0 %29
    %v31 = vrsqrt.pop %v30
    %v32 = vmul.f32 %v30, %v31
    %vm33 = vcmp.eq.f32.partialorder %v30, inf
    %v34 = vsel %vm33, %v30, %v32
    %vm35 = vcmp.eq.f32.partialorder %v30, 0.0
    %v36 = vand.u32 %v30, 2147483648
    %v37 = vsel %vm35, %v36, %v34
    %v38 = vadd.f32 %v37, 1e-06
    %v39 = vrcp.pop %v38
    %v40 = vmul.f32 %v37, %v39
    %v41 = vld [vmem:[%s1] sm:$0xff]
    %v42 = vmul.f32 %v41, %v40
    %v43 = vadd.f32 %v42, 1.0
    %45 = vset.pattern.permute.xlu0 0
    %46 = vperm.xlu0 %45, %v43
    %v47 = vpop.permute.xlu0 %46
    %v49 = vmul.f32 %v24, %v47
    %v50 = vmul.f32 %v25, %v47
    %52 = vset.pattern.permute.xlu0 1
    %53 = vperm.xlu0 %52, %v41
    %v54 = vpop.permute.xlu0 %53
    %v56 = vadd.f32 %v49, %v54
    %v57 = vadd.f32 %v50, %v54
    %58 = vst [vmem:[#allocation5] sm:$0xff] %v56
    %59 = vst [vmem:[#allocation5 + $0x8] sm:$0xff] %v57
    // Predicated region
    $region14: #{tpu_custom_call.1} parent=1 // pred_check
      _
    $region15: #{tpu_custom_call.1} parent=1 // pred_check_branch
      %61 = sbr.rel (0) target = $region17
    $region16: #{tpu_custom_call.1} parent=1 // pred_region
      %s63 = ssub.s32 256, 256
      %64 = vsyncadd [#allocation4], %s63
      %s66 = sshll.u32 [#allocation5], 4
      %s67 = int_to_ptr.vmem [resolvable:$true] %s66
      %69 = dma.vmem_to_hbm [thread:$0]  %s67, 256, %s2, [#allocation4]
    $region17: #{tpu_custom_call.1} parent=1 // pred_fallthru
      _
    // Predicated region
    $region18: #{tpu_custom_call.1} parent=1 // pred_check
      _
    $region19: #{tpu_custom_call.1} parent=1 // pred_check_branch
      %71 = sbr.rel (0) target = $region21
    $region20: #{tpu_custom_call.1} parent=1 // pred_region
      %72 = dma.done [#allocation4], 256
    $region21: #{tpu_custom_call.1} parent=1 // pred_fallthru
      _
    %73 = vsyncpa [#allocation3], 1
    %74 = vsyncpa [#allocation4], 1

</llo_original>
